<compile_context>
chip_gen: v7x
topology: tpu7x:2x2x1
jax: 0.10.0
libtpu: 0.0.40
codegen_flags: <defaults>
</compile_context>

<pallas_src>
import functools

import jax
import jax.numpy as jnp
from jax.experimental import pallas as pl
from jax.experimental.pallas import tpu as pltpu


def _dwsep_kernel(x_ref, dw_ref, pw_ref, o_ref, *, H, W, matmul_dtype):
    # x_ref : (1, C, HWp)      flattened NCHW image (lane tail zero-padded)
    # dw_ref: (3, 3, C, 1)     depthwise weights (per-channel, lane-broadcast)
    # pw_ref: (Cout, C)        pointwise weights
    # o_ref : (1, Cout, HWp)   lane-dense output slab
    HWp = x_ref.shape[2]

    # Single load of the image slab + hoisted depthwise-weight load/cast.
    x = x_ref[0].astype(jnp.float32)          # (C, HWp)
    dw = dw_ref[...].astype(jnp.float32)      # (3, 3, C, 1)

    # Destination-pixel border masks, computed once and shared by all taps.
    p = jax.lax.broadcasted_iota(jnp.int32, (1, HWp), 1)
    w_pos = p % W
    m_top = p >= W                  # dy = 0: source row h-1 inside the image
    m_bot = p < (H - 1) * W         # dy = 2: source row h+1 inside the image
    m_left = w_pos >= 1             # dx = 0: source col w-1 inside the image
    m_right = w_pos <= W - 2        # dx = 2: source col w+1 inside the image

    # Row-shifted slab variants via lane rolls (XLU), top/bottom masks applied
    # exactly once each.  rolls wrap, but every wrapped element is killed either
    # by these row masks or by the per-column-group masks below.
    x_up = jnp.where(m_top, pltpu.roll(x, W, axis=1), 0.0)        # src row h-1
    x_dn = jnp.where(m_bot, pltpu.roll(x, HWp - W, axis=1), 0.0)  # src row h+1
    rows = (x_up, x, x_dn)                                        # dy = 0, 1, 2

    # Three independent partial accumulators (one per column group) so the
    # VALU add chains pipeline; a single select per off-center column group.
    acc_c = dw[0, 1] * rows[0] + dw[1, 1] * rows[1] + dw[2, 1] * rows[2]
    acc_l = (dw[0, 0] * pltpu.roll(rows[0], 1, axis=1)            # src col w-1
             + dw[1, 0] * pltpu.roll(rows[1], 1, axis=1)
             + dw[2, 0] * pltpu.roll(rows[2], 1, axis=1))
    acc_r = (dw[0, 2] * pltpu.roll(rows[0], HWp - 1, axis=1)      # src col w+1
             + dw[1, 2] * pltpu.roll(rows[1], HWp - 1, axis=1)
             + dw[2, 2] * pltpu.roll(rows[2], HWp - 1, axis=1))
    acc = acc_c + jnp.where(m_left, acc_l, 0.0) + jnp.where(m_right, acc_r, 0.0)

    # Pointwise 1x1: (Cout, C) @ (C, HWp) on the MXU, f32 accumulation.
    # bf16 operands (default) give ~3x MXU throughput on all generations.
    pw = pw_ref[...]
    out = jnp.dot(pw.astype(matmul_dtype), acc.astype(matmul_dtype),
                  preferred_element_type=jnp.float32)
    o_ref[0] = out.astype(o_ref.dtype)


def depthwise_separable_conv(x_nchw, dw_weight, pw_weight, *,
                             matmul_dtype=jnp.bfloat16):
    """Forward pass matching PyTorch DepthwiseSeparableConv.

    x_nchw   : (B, C, H, W)
    dw_weight: (C, 1, 3, 3)     depthwise weight (PyTorch layout)
    pw_weight: (Cout, C, 1, 1)  pointwise weight (PyTorch layout)
    matmul_dtype: operand dtype of the pointwise MXU matmul (accumulation is
                  always f32).  Pass jnp.float32 for bit-tight numerics.
    returns  : (B, Cout, H, W)
    """
    B, C, H, W = x_nchw.shape
    Cout = pw_weight.shape[0]
    HW = H * W
    HWp = ((HW + 127) // 128) * 128   # lane-dense slabs -> unmasked vst

    # Free contiguous reshape (NCHW order preserved); zero-pad the lane tail
    # only when H*W is not already a multiple of 128 (no-op at the test shape).
    x_flat = x_nchw.reshape(B, C, HW)
    if HWp != HW:
        x_flat = jnp.pad(x_flat, ((0, 0), (0, 0), (0, HWp - HW)))

    # Tiny weight reshuffles (negligible next to activation traffic).
    dw_k = jnp.transpose(dw_weight[:, 0, :, :], (1, 2, 0))[..., None]  # (3,3,C,1)
    dw_k = dw_k.astype(jnp.float32)
    pw_k = pw_weight[:, :, 0, 0]                                       # (Cout, C)

    x_item = jnp.dtype(x_nchw.dtype).itemsize
    cost = pl.CostEstimate(
        flops=2 * B * HW * C * (9 + Cout),
        transcendentals=0,
        bytes_accessed=(B * C * HWp + B * Cout * HWp) * x_item
        + dw_k.size * jnp.dtype(dw_k.dtype).itemsize
        + pw_k.size * jnp.dtype(pw_k.dtype).itemsize,
    )

    # TODO(synk): for large images, add a spatial row-tile grid axis (pick
    #   tile_rows so tile_rows*W % 128 == 0) with a 1-row halo via an
    #   overlapping element-indexed block or manual DMA, sized per generation
    #   (scoped VMEM default 16/32/32 MiB on v5e/v6e/v7x, keep <= ~48 MiB total
    #   on v7x's 64 MiB physical VMEM).
    # TODO(synk): for realistic channel counts, fold dw into pw in the wrapper
    #   (Wf[o, ky, kx, c] = pw[o, c] * dw[c, ky, kx]) and feed the 9 stacked
    #   taps as a (9C, HW_tile) im2col slab into one (Cout, 9C) MXU matmul,
    #   replacing the VPU depthwise pass (K = C badly underfills the MXU).
    # TODO(synk): at tiny C (C=4) half of every vreg's sublanes idles; stacking
    #   the batch as (B*C, HW) in a single grid step (or padding C to 8) would
    #   fill the sublane axis at the cost of fewer parallel grid steps.
    out_flat = pl.pallas_call(
        functools.partial(_dwsep_kernel, H=H, W=W, matmul_dtype=matmul_dtype),
        out_shape=jax.ShapeDtypeStruct((B, Cout, HWp), x_nchw.dtype),
        grid_spec=pltpu.PrefetchScalarGridSpec(
            num_scalar_prefetch=0,
            grid=(B,),
            in_specs=[
                pl.BlockSpec((1, C, HWp), lambda b: (b, 0, 0)),
                pl.BlockSpec((3, 3, C, 1), lambda b: (0, 0, 0, 0)),
                pl.BlockSpec((Cout, C), lambda b: (0, 0)),
            ],
            out_specs=pl.BlockSpec((1, Cout, HWp), lambda b: (b, 0, 0)),
        ),
        compiler_params=pltpu.CompilerParams(
            dimension_semantics=("parallel",),       # >= 2 steps -> both v7x TCs
            vmem_limit_bytes=48 * 1024 * 1024,       # above scoped default, v7x-safe
        ),
        cost_estimate=cost,
    )(x_flat, dw_k, pw_k)

    # Drop the lane padding (no-op here) and free reshape back to NCHW.
    return out_flat[:, :, :HW].reshape(B, Cout, H, W)


def _reference(x_nchw, dw_weight, pw_weight):
    # Pure-JAX reference using lax conv (NCHW, same as PyTorch).
    C = x_nchw.shape[1]
    dw_out = jax.lax.conv_general_dilated(
        x_nchw, dw_weight,
        window_strides=(1, 1), padding=((1, 1), (1, 1)),
        feature_group_count=C,
        dimension_numbers=("NCHW", "OIHW", "NCHW"),
    )
    return jax.lax.conv_general_dilated(
        dw_out, pw_weight,
        window_strides=(1, 1), padding=((0, 0), (0, 0)),
        dimension_numbers=("NCHW", "OIHW", "NCHW"),
    )


if __name__ == "__main__":
    B, C, H, W = 2, 4, 16, 16
    Cout = 8

    key = jax.random.PRNGKey(0)
    kx, kdw, kpw = jax.random.split(key, 3)
    x = jax.random.normal(kx, (B, C, H, W), dtype=jnp.float32)
    # Deterministic parameter init (shapes from nn.Conv2d in __init__):
    dw_weight = jax.random.normal(kdw, (C, 1, 3, 3), dtype=jnp.float32) * 0.1
    pw_weight = jax.random.normal(kpw, (Cout, C, 1, 1), dtype=jnp.float32) * 0.1

    ref = jax.block_until_ready(_reference(x, dw_weight, pw_weight))

    # Default path: bf16 MXU operands, f32 accumulate (bf16-appropriate tol).
    out_bf16 = jax.block_until_ready(
        depthwise_separable_conv(x, dw_weight, pw_weight))
    assert out_bf16.shape == (B, Cout, H, W), out_bf16.shape
    assert jnp.allclose(out_bf16, ref, atol=1e-2, rtol=1e-2), (
        float(jnp.abs(out_bf16 - ref).max()))

    # f32-operand path: bit-tight, validated at 1e-4.
    out_f32 = jax.block_until_ready(
        depthwise_separable_conv(x, dw_weight, pw_weight,
                                 matmul_dtype=jnp.float32))
    assert jnp.allclose(out_f32, ref, atol=1e-4, rtol=1e-4), (
        float(jnp.abs(out_f32 - ref).max()))

    print("KERNEL_OK")
</pallas_src>

<mosaic_0001>
module attributes {stable_mosaic.version = 11 : i64} {
  func.func @_dwsep_kernel(%arg0: i32, %arg1: memref<1x4x256xf32, #tpu.memory_space<vmem>>, %arg2: memref<3x3x4x1xf32, #tpu.memory_space<vmem>>, %arg3: memref<8x4xf32, #tpu.memory_space<vmem>>, %arg4: memref<1x8x256xf32, #tpu.memory_space<vmem>>) attributes {dimension_semantics = [#tpu.dimension_semantics<parallel>], iteration_bounds = array<i64: 2>, scalar_prefetch = 0 : i64, scratch_operands = 0 : i64, tpu.core_type = #tpu.core_type<tc>, window_params = [{transform_indices = @transform_0, window_bounds = array<i64: 1, 4, 256>}, {pipeline_mode = #tpu.pipeline_mode<synchronous>, transform_indices = @transform_1, window_bounds = array<i64: 3, 3, 4, 1>}, {pipeline_mode = #tpu.pipeline_mode<synchronous>, transform_indices = @transform_2, window_bounds = array<i64: 8, 4>}, {transform_indices = @transform_3, window_bounds = array<i64: 1, 8, 256>}]} {
    %c0 = arith.constant 0 : index
    %c0_0 = arith.constant 0 : index
    %c0_1 = arith.constant 0 : index
    %0 = vector.load %arg1[%c0, %c0_0, %c0_1] : memref<1x4x256xf32, #tpu.memory_space<vmem>>, vector<1x4x256xf32>
    %1 = vector.shape_cast %0 : vector<1x4x256xf32> to vector<4x256xf32>
    %c0_2 = arith.constant 0 : index
    %c0_3 = arith.constant 0 : index
    %c0_4 = arith.constant 0 : index
    %c0_5 = arith.constant 0 : index
    %2 = vector.load %arg2[%c0_2, %c0_3, %c0_4, %c0_5] : memref<3x3x4x1xf32, #tpu.memory_space<vmem>>, vector<3x3x4x1xf32>
    %3 = tpu.iota {dimensions = array<i32: 1>} : vector<1x256xi32>
    %c16_i32 = arith.constant 16 : i32
    %c0_i32 = arith.constant 0 : i32
    %4 = arith.cmpi eq, %c16_i32, %c0_i32 : i32
    %c1_i32 = arith.constant 1 : i32
    %5 = arith.select %4, %c1_i32, %c16_i32 : i32
    %6 = vector.broadcast %5 : i32 to vector<1x256xi32>
    %7 = arith.remsi %3, %6 : vector<1x256xi32>
    %c0_i32_6 = arith.constant 0 : i32
    %8 = vector.broadcast %c0_i32_6 : i32 to vector<1x256xi32>
    %9 = arith.cmpi ne, %7, %8 : vector<1x256xi32>
    %c0_i32_7 = arith.constant 0 : i32
    %10 = vector.broadcast %c0_i32_7 : i32 to vector<1x256xi32>
    %11 = arith.cmpi slt, %7, %10 : vector<1x256xi32>
    %c0_i32_8 = arith.constant 0 : i32
    %12 = arith.cmpi slt, %5, %c0_i32_8 : i32
    %13 = vector.broadcast %12 : i1 to vector<1x256xi1>
    %14 = vector.broadcast %13 : vector<1x256xi1> to vector<1x256xi1>
    %15 = arith.xori %11, %14 : vector<1x256xi1>
    %16 = arith.andi %15, %9 : vector<1x256xi1>
    %17 = vector.broadcast %5 : i32 to vector<1x256xi32>
    %18 = arith.addi %7, %17 : vector<1x256xi32>
    %19 = arith.select %16, %18, %7 : vector<1x256xi1>, vector<1x256xi32>
    %c16_i32_9 = arith.constant 16 : i32
    %20 = vector.broadcast %c16_i32_9 : i32 to vector<1x256xi32>
    %21 = arith.cmpi sge, %3, %20 : vector<1x256xi32>
    %c240_i32 = arith.constant 240 : i32
    %22 = vector.broadcast %c240_i32 : i32 to vector<1x256xi32>
    %23 = arith.cmpi slt, %3, %22 : vector<1x256xi32>
    %c1_i32_10 = arith.constant 1 : i32
    %24 = vector.broadcast %c1_i32_10 : i32 to vector<1x256xi32>
    %25 = arith.cmpi sge, %19, %24 : vector<1x256xi32>
    %c14_i32 = arith.constant 14 : i32
    %26 = vector.broadcast %c14_i32 : i32 to vector<1x256xi32>
    %27 = arith.cmpi sle, %19, %26 : vector<1x256xi32>
    %c16_i32_11 = arith.constant 16 : i32
    %28 = tpu.dynamic_rotate %1 by %c16_i32_11 dim 1 : vector<4x256xf32>, i32 -> vector<4x256xf32>
    %cst = arith.constant 0.000000e+00 : f32
    %29 = vector.shape_cast %21 : vector<1x256xi1> to vector<1x256xi1>
    %30 = vector.broadcast %29 : vector<1x256xi1> to vector<4x256xi1>
    %31 = vector.broadcast %cst : f32 to vector<4x256xf32>
    %32 = arith.select %30, %28, %31 : vector<4x256xi1>, vector<4x256xf32>
    %c240_i32_12 = arith.constant 240 : i32
    %33 = tpu.dynamic_rotate %1 by %c240_i32_12 dim 1 : vector<4x256xf32>, i32 -> vector<4x256xf32>
    %cst_13 = arith.constant 0.000000e+00 : f32
    %34 = vector.shape_cast %23 : vector<1x256xi1> to vector<1x256xi1>
    %35 = vector.broadcast %34 : vector<1x256xi1> to vector<4x256xi1>
    %36 = vector.broadcast %cst_13 : f32 to vector<4x256xf32>
    %37 = arith.select %35, %33, %36 : vector<4x256xi1>, vector<4x256xf32>
    %38 = vector.extract_strided_slice %2 {offsets = [0, 1, 0, 0], sizes = [1, 1, 4, 1], strides = [1, 1, 1, 1]} : vector<3x3x4x1xf32> to vector<1x1x4x1xf32>
    %39 = vector.shape_cast %38 : vector<1x1x4x1xf32> to vector<4x1xf32>
    %40 = vector.broadcast %39 : vector<4x1xf32> to vector<4x256xf32>
    %41 = arith.mulf %40, %32 : vector<4x256xf32>
    %42 = vector.extract_strided_slice %2 {offsets = [1, 1, 0, 0], sizes = [1, 1, 4, 1], strides = [1, 1, 1, 1]} : vector<3x3x4x1xf32> to vector<1x1x4x1xf32>
    %43 = vector.shape_cast %42 : vector<1x1x4x1xf32> to vector<4x1xf32>
    %44 = vector.broadcast %43 : vector<4x1xf32> to vector<4x256xf32>
    %45 = arith.mulf %44, %1 : vector<4x256xf32>
    %46 = arith.addf %41, %45 : vector<4x256xf32>
    %47 = vector.extract_strided_slice %2 {offsets = [2, 1, 0, 0], sizes = [1, 1, 4, 1], strides = [1, 1, 1, 1]} : vector<3x3x4x1xf32> to vector<1x1x4x1xf32>
    %48 = vector.shape_cast %47 : vector<1x1x4x1xf32> to vector<4x1xf32>
    %49 = vector.broadcast %48 : vector<4x1xf32> to vector<4x256xf32>
    %50 = arith.mulf %49, %37 : vector<4x256xf32>
    %51 = arith.addf %46, %50 : vector<4x256xf32>
    %52 = vector.extract_strided_slice %2 {offsets = [0, 0, 0, 0], sizes = [1, 1, 4, 1], strides = [1, 1, 1, 1]} : vector<3x3x4x1xf32> to vector<1x1x4x1xf32>
    %53 = vector.shape_cast %52 : vector<1x1x4x1xf32> to vector<4x1xf32>
    %c1_i32_14 = arith.constant 1 : i32
    %54 = tpu.dynamic_rotate %32 by %c1_i32_14 dim 1 : vector<4x256xf32>, i32 -> vector<4x256xf32>
    %55 = vector.broadcast %53 : vector<4x1xf32> to vector<4x256xf32>
    %56 = arith.mulf %55, %54 : vector<4x256xf32>
    %57 = vector.extract_strided_slice %2 {offsets = [1, 0, 0, 0], sizes = [1, 1, 4, 1], strides = [1, 1, 1, 1]} : vector<3x3x4x1xf32> to vector<1x1x4x1xf32>
    %58 = vector.shape_cast %57 : vector<1x1x4x1xf32> to vector<4x1xf32>
    %c1_i32_15 = arith.constant 1 : i32
    %59 = tpu.dynamic_rotate %1 by %c1_i32_15 dim 1 : vector<4x256xf32>, i32 -> vector<4x256xf32>
    %60 = vector.broadcast %58 : vector<4x1xf32> to vector<4x256xf32>
    %61 = arith.mulf %60, %59 : vector<4x256xf32>
    %62 = arith.addf %56, %61 : vector<4x256xf32>
    %63 = vector.extract_strided_slice %2 {offsets = [2, 0, 0, 0], sizes = [1, 1, 4, 1], strides = [1, 1, 1, 1]} : vector<3x3x4x1xf32> to vector<1x1x4x1xf32>
    %64 = vector.shape_cast %63 : vector<1x1x4x1xf32> to vector<4x1xf32>
    %c1_i32_16 = arith.constant 1 : i32
    %65 = tpu.dynamic_rotate %37 by %c1_i32_16 dim 1 : vector<4x256xf32>, i32 -> vector<4x256xf32>
    %66 = vector.broadcast %64 : vector<4x1xf32> to vector<4x256xf32>
    %67 = arith.mulf %66, %65 : vector<4x256xf32>
    %68 = arith.addf %62, %67 : vector<4x256xf32>
    %69 = vector.extract_strided_slice %2 {offsets = [0, 2, 0, 0], sizes = [1, 1, 4, 1], strides = [1, 1, 1, 1]} : vector<3x3x4x1xf32> to vector<1x1x4x1xf32>
    %70 = vector.shape_cast %69 : vector<1x1x4x1xf32> to vector<4x1xf32>
    %c255_i32 = arith.constant 255 : i32
    %71 = tpu.dynamic_rotate %32 by %c255_i32 dim 1 : vector<4x256xf32>, i32 -> vector<4x256xf32>
    %72 = vector.broadcast %70 : vector<4x1xf32> to vector<4x256xf32>
    %73 = arith.mulf %72, %71 : vector<4x256xf32>
    %74 = vector.extract_strided_slice %2 {offsets = [1, 2, 0, 0], sizes = [1, 1, 4, 1], strides = [1, 1, 1, 1]} : vector<3x3x4x1xf32> to vector<1x1x4x1xf32>
    %75 = vector.shape_cast %74 : vector<1x1x4x1xf32> to vector<4x1xf32>
    %c255_i32_17 = arith.constant 255 : i32
    %76 = tpu.dynamic_rotate %1 by %c255_i32_17 dim 1 : vector<4x256xf32>, i32 -> vector<4x256xf32>
    %77 = vector.broadcast %75 : vector<4x1xf32> to vector<4x256xf32>
    %78 = arith.mulf %77, %76 : vector<4x256xf32>
    %79 = arith.addf %73, %78 : vector<4x256xf32>
    %80 = vector.extract_strided_slice %2 {offsets = [2, 2, 0, 0], sizes = [1, 1, 4, 1], strides = [1, 1, 1, 1]} : vector<3x3x4x1xf32> to vector<1x1x4x1xf32>
    %81 = vector.shape_cast %80 : vector<1x1x4x1xf32> to vector<4x1xf32>
    %c255_i32_18 = arith.constant 255 : i32
    %82 = tpu.dynamic_rotate %37 by %c255_i32_18 dim 1 : vector<4x256xf32>, i32 -> vector<4x256xf32>
    %83 = vector.broadcast %81 : vector<4x1xf32> to vector<4x256xf32>
    %84 = arith.mulf %83, %82 : vector<4x256xf32>
    %85 = arith.addf %79, %84 : vector<4x256xf32>
    %cst_19 = arith.constant 0.000000e+00 : f32
    %86 = vector.shape_cast %25 : vector<1x256xi1> to vector<1x256xi1>
    %87 = vector.broadcast %86 : vector<1x256xi1> to vector<4x256xi1>
    %88 = vector.broadcast %cst_19 : f32 to vector<4x256xf32>
    %89 = arith.select %87, %68, %88 : vector<4x256xi1>, vector<4x256xf32>
    %90 = arith.addf %51, %89 : vector<4x256xf32>
    %cst_20 = arith.constant 0.000000e+00 : f32
    %91 = vector.shape_cast %27 : vector<1x256xi1> to vector<1x256xi1>
    %92 = vector.broadcast %91 : vector<1x256xi1> to vector<4x256xi1>
    %93 = vector.broadcast %cst_20 : f32 to vector<4x256xf32>
    %94 = arith.select %92, %85, %93 : vector<4x256xi1>, vector<4x256xf32>
    %95 = arith.addf %90, %94 : vector<4x256xf32>
    %c0_21 = arith.constant 0 : index
    %c0_22 = arith.constant 0 : index
    %96 = vector.load %arg3[%c0_21, %c0_22] : memref<8x4xf32, #tpu.memory_space<vmem>>, vector<8x4xf32>
    %97 = arith.truncf %96 : vector<8x4xf32> to vector<8x4xbf16>
    %98 = arith.truncf %95 : vector<4x256xf32> to vector<4x256xbf16>
    %cst_23 = arith.constant dense<0.000000e+00> : vector<8x256xf32>
    %99 = tpu.matmul %97, %98, %cst_23 {dimension_numbers = #tpu.dot_dimension_numbers<[1], [0], [0], [1], [0, 0, 1, 1], [], []>} : vector<8x4xbf16>, vector<4x256xbf16>, vector<8x256xf32> -> vector<8x256xf32>
    %c0_24 = arith.constant 0 : index
    %c0_25 = arith.constant 0 : index
    %c0_26 = arith.constant 0 : index
    %100 = vector.load %arg4[%c0_24, %c0_25, %c0_26] : memref<1x8x256xf32, #tpu.memory_space<vmem>>, vector<1x8x256xf32>
    %101 = vector.shape_cast %100 : vector<1x8x256xf32> to vector<8x256xf32>
    %102 = vector.shape_cast %99 : vector<8x256xf32> to vector<1x8x256xf32>
    tpu.vector_store %arg4[%c0_24, %c0_25, %c0_26], %102 {strides = array<i32>} : memref<1x8x256xf32, #tpu.memory_space<vmem>>, vector<1x8x256xf32>,
    return
  }
  func.func @transform_0(%arg0: i32) -> (i32, i32, i32) {
    %c0_i32 = arith.constant 0 : i32
    %c0_i32_0 = arith.constant 0 : i32
    %c0_i32_1 = arith.constant 0 : i32
    return %arg0, %c0_i32, %c0_i32_0 : i32, i32, i32
  }
  func.func @transform_1(%arg0: i32) -> (i32, i32, i32, i32) {
    %c0_i32 = arith.constant 0 : i32
    %c0_i32_0 = arith.constant 0 : i32
    %c0_i32_1 = arith.constant 0 : i32
    %c0_i32_2 = arith.constant 0 : i32
    %c0_i32_3 = arith.constant 0 : i32
    return %c0_i32, %c0_i32_0, %c0_i32_1, %c0_i32_2 : i32, i32, i32, i32
  }
  func.func @transform_2(%arg0: i32) -> (i32, i32) {
    %c0_i32 = arith.constant 0 : i32
    %c0_i32_0 = arith.constant 0 : i32
    %c0_i32_1 = arith.constant 0 : i32
    return %c0_i32, %c0_i32_0 : i32, i32
  }
  func.func @transform_3(%arg0: i32) -> (i32, i32, i32) {
    %c0_i32 = arith.constant 0 : i32
    %c0_i32_0 = arith.constant 0 : i32
    %c0_i32_1 = arith.constant 0 : i32
    return %arg0, %c0_i32, %c0_i32_0 : i32, i32, i32
  }
}

</mosaic_0001>

<llo_original>
// kernel: tpu_custom_call.1
$region0: #{tpu_custom_call.1}
  #allocation0 [shape = 'u32[]', space=smem, size = 0x4, offset = 0x4, fixed_abs, tag = 'smem constant byte address 0x4 - core index']
  #allocation1 [shape = 'u32[144,128]{1,0:T(1,128)}', space=vmem, size = 0x12000, scoped, tag = 'internal scratch']
  %s0 = inlined_call_operand.vmem [shape: f32[2,4,256], index: 0, kind: input, shape index: {}]
  %s1 = inlined_call_operand.vmem [shape: f32[3,3,4,1], index: 1, kind: input, shape index: {}]
  %s2 = inlined_call_operand.vmem [shape: f32[8,4], index: 2, kind: input, shape index: {}]
  %s3 = inlined_call_operand.hbm [shape: f32[2,8,256], index: 3, kind: output, shape index: {}]
  %s4 = sld [smem:[#allocation0]]
  $region45: #{tpu_custom_call.1} parent=0
    _
  %s6 = ssub.s32 1, %s4
  %s7 = scalar_select 0, %s6, %s4
  $region1: #{tpu_custom_call.1} parent=0
    #allocation2 [shape = 'u8[16384]{0}', space=vmem, size = 0x4000, scoped, tag = 'output window, operand 0']
    #allocation3 [shape = 's32[2]{0}', space=sflag, size = 0x8, scoped, tag = 'scoped memory for tpu_custom_call.1']
    %8 = vsyncpa [#allocation3], 0
    %s9 = scalar_lea.sflag [#allocation3], 1
    %10 = vsyncpa %s9, 0
    loop: start=0, step=1, limit=4
    $region2: #{tpu_custom_call.1} parent=1 // loop_pre_header
      _
    $region3: #{tpu_custom_call.1} parent=1 // loop_header
      %s12 = sphi 0, %s16
      %p13 = scmp.ge.s32.totalorder %s12, 4
      %s22 = sphi 0, %s24
      %s25 = sphi 0, %s22
      %s26 = sphi 0, %s25
      %s42 = sphi 0, %s26
      %s46 = sphi 0, %s46
      %s48 = sphi 0, %s46
      %s49 = sphi 0, %s48
      %s63 = sphi 0, %s49
      %s67 = sphi 0, %s67
      %s69 = sphi 0, %s67
      %s70 = sphi 0, %s69
      %s84 = sphi 0, %s70
      %s90 = sphi 0, %s92
      %s93 = sphi 0, %s90
      %s94 = sphi 0, %s93
      %s110 = sphi 0, %s94
    $region4: #{tpu_custom_call.1} parent=1 // loop_header_branch
      %15 = sbr.rel (%p13) target = $region8
    $region5: #{tpu_custom_call.1} parent=1 // loop_body
      %s17 = ssub.s32 %s12, 1
      %s18 = ssub.s32 %s12, 2
      %s19 = sadd.s32 %s12, 1
      %s20 = ssub.s32 %s12, %s19
      %p21 = scmp.eq.s32.totalorder %s20, 0
      %s23 = sadd.s32 %s22, 1
      %s24 = scalar_select %p21, %s22, %s23
      %p27 = pneg %p21
      %p28 = scmp.eq.s32.totalorder %s12, 1
      %p29 = por %p27, %p28
      %p30 = scmp.ne.s32.totalorder %s22, %s25
      %p31 = scmp.eq.s32.totalorder %s12, 0
      %p32 = por %p30, %p31
      %p33 = scmp.ne.s32.totalorder %s22, %s25
      %p34 = scmp.eq.s32.totalorder %s17, 1
      %p35 = por %p33, %p34
      %p36 = scmp.ne.s32.totalorder %s25, %s26
      %p37 = scmp.eq.s32.totalorder %s17, 0
      %p38 = por %p36, %p37
      %p39 = scmp.ne.s32.totalorder %s25, %s26
      %p40 = scmp.eq.s32.totalorder %s18, 1
      %p41 = por %p39, %p40
      %p43 = scmp.ne.s32.totalorder %s26, %s42
      %p44 = scmp.eq.s32.totalorder %s18, 0
      %p45 = por %p43, %p44
      %s47 = sadd.s32 %s46, 1
      %p50 = scmp.eq.s32.totalorder %s12, 1
      %p51 = scmp.ne.s32.totalorder %s46, %s48
      %p52 = scmp.eq.s32.totalorder %s12, 0
      %p53 = por %p51, %p52
      %p54 = scmp.ne.s32.totalorder %s46, %s48
      %p55 = scmp.eq.s32.totalorder %s17, 1
      %p56 = por %p54, %p55
      %p57 = scmp.ne.s32.totalorder %s48, %s49
      %p58 = scmp.eq.s32.totalorder %s17, 0
      %p59 = por %p57, %p58
      %p60 = scmp.ne.s32.totalorder %s48, %s49
      %p61 = scmp.eq.s32.totalorder %s18, 1
      %p62 = por %p60, %p61
      %p64 = scmp.ne.s32.totalorder %s49, %s63
      %p65 = scmp.eq.s32.totalorder %s18, 0
      %p66 = por %p64, %p65
      %s68 = sadd.s32 %s67, 1
      %p71 = scmp.eq.s32.totalorder %s12, 1
      %p72 = scmp.ne.s32.totalorder %s67, %s69
      %p73 = scmp.eq.s32.totalorder %s12, 0
      %p74 = por %p72, %p73
      %p75 = scmp.ne.s32.totalorder %s67, %s69
      %p76 = scmp.eq.s32.totalorder %s17, 1
      %p77 = por %p75, %p76
      %p78 = scmp.ne.s32.totalorder %s69, %s70
      %p79 = scmp.eq.s32.totalorder %s17, 0
      %p80 = por %p78, %p79
      %p81 = scmp.ne.s32.totalorder %s69, %s70
      %p82 = scmp.eq.s32.totalorder %s18, 1
      %p83 = por %p81, %p82
      %p85 = scmp.ne.s32.totalorder %s70, %s84
      %p86 = scmp.eq.s32.totalorder %s18, 0
      %p87 = por %p85, %p86
      %s88 = ssub.s32 %s12, %s19
      %p89 = scmp.eq.s32.totalorder %s88, 0
      %s91 = sadd.s32 %s90, 1
      %s92 = scalar_select %p89, %s90, %s91
      %p95 = pneg %p89
      %p96 = scmp.eq.s32.totalorder %s12, 1
      %p97 = por %p95, %p96
      %p98 = scmp.ne.s32.totalorder %s90, %s93
      %p99 = scmp.eq.s32.totalorder %s12, 0
      %p100 = por %p98, %p99
      %p101 = scmp.ne.s32.totalorder %s90, %s93
      %p102 = scmp.eq.s32.totalorder %s17, 1
      %p103 = por %p101, %p102
      %p104 = scmp.ne.s32.totalorder %s93, %s94
      %p105 = scmp.eq.s32.totalorder %s17, 0
      %p106 = por %p104, %p105
      %p107 = scmp.ne.s32.totalorder %s93, %s94
      %p108 = scmp.eq.s32.totalorder %s18, 1
      %p109 = por %p107, %p108
      %p111 = scmp.ne.s32.totalorder %s94, %s110
      %p112 = scmp.eq.s32.totalorder %s18, 0
      %p113 = por %p111, %p112
      %p114 = scmp.le.s32.totalorder 1, %s12
      %p115 = scmp.lt.s32.totalorder %s12, 3
      %p116 = pnand %p114, %p115
      %p117 = pneg %p116
      // Predicated region
      $region9: #{tpu_custom_call.1} parent=5 // pred_check
        _
      $region10: #{tpu_custom_call.1} parent=5 // pred_check_branch
        %119 = sbr.rel (%p116) target = $region12
      $region11: #{tpu_custom_call.1} parent=5 // pred_region
        %s120 = ssub.s32 %s12, 1
        // Predicated region
        $region13: #{tpu_custom_call.1} parent=11 // pred_check
          %p121 = pneg %p59
        $region14: #{tpu_custom_call.1} parent=11 // pred_check_branch
          %123 = sbr.rel (%p121) target = $region16
        $region15: #{tpu_custom_call.1} parent=11 // pred_region
          _
        $region16: #{tpu_custom_call.1} parent=11 // pred_fallthru
          _
        // Predicated region
        $region17: #{tpu_custom_call.1} parent=11 // pred_check
          %p124 = pneg %p80
        $region18: #{tpu_custom_call.1} parent=11 // pred_check_branch
          %126 = sbr.rel (%p124) target = $region20
        $region19: #{tpu_custom_call.1} parent=11 // pred_region
          _
        $region20: #{tpu_custom_call.1} parent=11 // pred_fallthru
          _
      $region12: #{tpu_custom_call.1} parent=5 // pred_fallthru
        _
      %p127 = scmp.lt.s32.totalorder %s12, 2
      // Predicated region
      $region21: #{tpu_custom_call.1} parent=5 // pred_check
        %p128 = pneg %p127
      $region22: #{tpu_custom_call.1} parent=5 // pred_check_branch
        %130 = sbr.rel (%p128) target = $region24
      $region23: #{tpu_custom_call.1} parent=5 // pred_region
        // Predicated region
        $region25: #{tpu_custom_call.1} parent=23 // pred_check
          %p131 = pneg %p32
        $region26: #{tpu_custom_call.1} parent=23 // pred_check_branch
          %133 = sbr.rel (%p131) target = $region28
        $region27: #{tpu_custom_call.1} parent=23 // pred_region
          %p134 = scmp.lt.s32.totalorder %s12, 1
          %s135 = scalar_select %p134, %s12, 1
          %s136 = smul.addr %s135, 2
          %s137 = smul.addr %s136, 4
          %s138 = scalar_lea.vmem %s0, %s137
        $region28: #{tpu_custom_call.1} parent=23 // pred_fallthru
          _
      $region24: #{tpu_custom_call.1} parent=5 // pred_fallthru
        _
      %p139 = scmp.le.s32.totalorder 1, %s12
      %p140 = scmp.lt.s32.totalorder %s12, 3
      %p141 = pnand %p139, %p140
      %p142 = pneg %p141
      // Predicated region
      $region29: #{tpu_custom_call.1} parent=5 // pred_check
        _
      $region30: #{tpu_custom_call.1} parent=5 // pred_check_branch
        %144 = sbr.rel (%p141) target = $region32
      $region31: #{tpu_custom_call.1} parent=5 // pred_region
        %s145 = ssub.s32 %s12, 1
        %p146 = scmp.lt.s32.totalorder %s17, 1
        %s147 = scalar_select %p146, %s17, 1
        %s148 = smul.addr %s147, 2
        %s149 = smul.addr %s148, 4
        %s150 = scalar_lea.vmem %s0, %s149
        %p151 = pneg %p38
        %p152 = pneg %p35
        %p153 = pneg %p59
        %p154 = pneg %p56
        %p155 = pneg %p80
        %p156 = pneg %p77
        %p157 = pneg %p106
        %p158 = pneg %p103
        %s159 = sand.u32 %s93, 1
        %s160 = scalar_lea.sflag [#allocation3], %s159
        %s161 = sand.u32 %s93, 1
        %s162 = smul.addr %s161, 16
        %s163 = scalar_lea.vmem [#allocation2], %s162
        %p164 = scmp.lt.s32.totalorder %s17, 1
        %s165 = scalar_select %p164, %s17, 1
        %s166 = smul.addr %s165, 2
        %s167 = smul.addr %s166, 4
        %s168 = scalar_lea.vmem %s0, %s167
        %v170 = vld [vmem:[%s168] sm:$0xff]
        %v171 = vld [vmem:[%s1] sm:$0xf]
        %v172 = vld [vmem:[%s1 + $0x4] sm:$0xf]
        %v173 = vld [vmem:[%s1 + $0x8] sm:$0xf]
        %v174 = vld [vmem:[%s1 + $0xc] sm:$0xf]
        %v175 = vld [vmem:[%s1 + $0x10] sm:$0xf]
        %v176 = vld [vmem:[%s1 + $0x14] sm:$0xf]
        %v177 = vld [vmem:[%s1 + $0x18] sm:$0xf]
        %v178 = vld [vmem:[%s1 + $0x1c] sm:$0xf]
        %v179 = vld [vmem:[%s1 + $0x20] sm:$0xf]
        %v180 = vlaneseq
        %v181 = vand.u32 %v180, 127
        %v182 = vadd.s32 %v181, 128
        %vm183 = vcmp.lt.s32.totalorder %v181, 0
        %v184 = vsub.s32 0, %v181
        %v185 = vsel %vm183, %v184, %v181
        %v186 = vshrl.u32 %v185, 4
        %v187 = vand.u32 %v185, 15
        %v188 = vsub.s32 0, %v187
        %v189 = vsel %vm183, %v188, %v187
        %vm190 = vcmp.lt.s32.totalorder %v182, 0
        %v191 = vsub.s32 0, %v182
        %v192 = vsel %vm190, %v191, %v182
        %v193 = vshrl.u32 %v192, 4
        %v194 = vand.u32 %v192, 15
        %v195 = vsub.s32 0, %v194
        %v196 = vsel %vm190, %v195, %v194
        %vm197 = vcmp.ne.s32.totalorder %v189, 0
        %vm198 = vcmp.ne.s32.totalorder %v196, 0
        %vm199 = vcmp.lt.s32.totalorder %v189, 0
        %vm200 = vcmp.lt.s32.totalorder %v196, 0
        %vm201 = vmand %vm199, %vm197
        %vm202 = vmand %vm200, %vm198
        %v203 = vadd.s32 %v189, 16
        %v204 = vadd.s32 %v196, 16
        %v205 = vsel %vm201, %v203, %v189
        %v206 = vsel %vm202, %v204, %v196
        %vm207 = vcmp.ge.s32.totalorder %v181, 16
        %vm208 = vcmp.ge.s32.totalorder %v182, 16
        %vm209 = vcmp.lt.s32.totalorder %v181, 240
        %vm210 = vcmp.lt.s32.totalorder %v182, 240
        %vm211 = vcmp.ge.s32.totalorder %v205, 1
        %vm212 = vcmp.ge.s32.totalorder %v206, 1
        %vm213 = vcmp.le.s32.totalorder %v205, 14
        %vm214 = vcmp.le.s32.totalorder %v206, 14
        %v216 = vcombine.high %v170, %v170
        %218 = vrot.lane.b32.xlu0 %v170, 16
        %v219 = vpop.permute.xlu0 %218
        %220 = vrot.lane.b32.xlu0 %v216, 16
        %v221 = vpop.permute.xlu0 %220
        %vm222 = vcmp.lt.s32.totalorder %v181, 16
        %v223 = vsel %vm222, %v219, %v221
        %v224 = vsel %vm222, %v221, %v219
        %v225 = vsel %vm207, 1, 0
        %v226 = vsel %vm208, 1, 0
        %vm227 = vcmp.eq.s32.totalorder %v225, 1
        %vm228 = vcmp.eq.s32.totalorder %v226, 1
        %v229 = vsel %vm227, %v224, 0.0
        %v230 = vsel %vm228, %v223, 0.0
        %231 = vrot.lane.b32.xlu0 %v170, 112
        %v232 = vpop.permute.xlu0 %231
        %233 = vrot.lane.b32.xlu0 %v216, 112
        %v234 = vpop.permute.xlu0 %233
        %vm235 = vcmp.lt.s32.totalorder %v181, 112
        %v236 = vsel %vm235, %v232, %v234
        %v237 = vsel %vm235, %v234, %v232
        %v238 = vsel %vm209, 1, 0
        %v239 = vsel %vm210, 1, 0
        %vm240 = vcmp.eq.s32.totalorder %v238, 1
        %vm241 = vcmp.eq.s32.totalorder %v239, 1
        %v242 = vsel %vm240, %v236, 0.0
        %v243 = vsel %vm241, %v237, 0.0
        %245 = vset.pattern.permute.xlu0 0
        %246 = vperm.xlu0 %245, %v172
        %v247 = vpop.permute.xlu0 %246
        %v249 = vmul.f32 %v247, %v229
        %v250 = vmul.f32 %v247, %v230
        %252 = vset.pattern.permute.xlu0 0
        %253 = vperm.xlu0 %252, %v175
        %v254 = vpop.permute.xlu0 %253
        %v256 = vmul.f32 %v254, %v170
        %v257 = vmul.f32 %v254, %v216
        %v258 = vadd.f32 %v249, %v256
        %v259 = vadd.f32 %v250, %v257
        %261 = vset.pattern.permute.xlu0 0
        %262 = vperm.xlu0 %261, %v178
        %v263 = vpop.permute.xlu0 %262
        %v265 = vmul.f32 %v263, %v242
        %v266 = vmul.f32 %v263, %v243
        %v267 = vadd.f32 %v258, %v265
        %v268 = vadd.f32 %v259, %v266
        %269 = vrot.lane.b32.xlu0 %v229, 1
        %v270 = vpop.permute.xlu0 %269
        %271 = vrot.lane.b32.xlu0 %v230, 1
        %v272 = vpop.permute.xlu0 %271
        %vm273 = vcmp.lt.s32.totalorder %v181, 1
        %v274 = vsel %vm273, %v270, %v272
        %v275 = vsel %vm273, %v272, %v270
        %277 = vset.pattern.permute.xlu0 0
        %278 = vperm.xlu0 %277, %v171
        %v279 = vpop.permute.xlu0 %278
        %v281 = vmul.f32 %v279, %v275
        %v282 = vmul.f32 %v279, %v274
        %283 = vrot.lane.b32.xlu0 %v170, 1
        %v284 = vpop.permute.xlu0 %283
        %285 = vrot.lane.b32.xlu0 %v216, 1
        %v286 = vpop.permute.xlu0 %285
        %v287 = vsel %vm273, %v284, %v286
        %v288 = vsel %vm273, %v286, %v284
        %290 = vset.pattern.permute.xlu0 0
        %291 = vperm.xlu0 %290, %v174
        %v292 = vpop.permute.xlu0 %291
        %v294 = vmul.f32 %v292, %v288
        %v295 = vmul.f32 %v292, %v287
        %v296 = vadd.f32 %v281, %v294
        %v297 = vadd.f32 %v282, %v295
        %298 = vrot.lane.b32.xlu0 %v242, 1
        %v299 = vpop.permute.xlu0 %298
        %300 = vrot.lane.b32.xlu0 %v243, 1
        %v301 = vpop.permute.xlu0 %300
        %v302 = vsel %vm273, %v299, %v301
        %v303 = vsel %vm273, %v301, %v299
        %305 = vset.pattern.permute.xlu0 0
        %306 = vperm.xlu0 %305, %v177
        %v307 = vpop.permute.xlu0 %306
        %v309 = vmul.f32 %v307, %v303
        %v310 = vmul.f32 %v307, %v302
        %v311 = vadd.f32 %v296, %v309
        %v312 = vadd.f32 %v297, %v310
        %313 = vrot.lane.b32.xlu0 %v229, 127
        %v314 = vpop.permute.xlu0 %313
        %315 = vrot.lane.b32.xlu0 %v230, 127
        %v316 = vpop.permute.xlu0 %315
        %vm317 = vcmp.lt.s32.totalorder %v181, 127
        %v318 = vsel %vm317, %v314, %v316
        %v319 = vsel %vm317, %v316, %v314
        %321 = vset.pattern.permute.xlu0 0
        %322 = vperm.xlu0 %321, %v173
        %v323 = vpop.permute.xlu0 %322
        %v325 = vmul.f32 %v323, %v318
        %v326 = vmul.f32 %v323, %v319
        %327 = vrot.lane.b32.xlu0 %v170, 127
        %v328 = vpop.permute.xlu0 %327
        %329 = vrot.lane.b32.xlu0 %v216, 127
        %v330 = vpop.permute.xlu0 %329
        %v331 = vsel %vm317, %v328, %v330
        %v332 = vsel %vm317, %v330, %v328
        %334 = vset.pattern.permute.xlu0 0
        %335 = vperm.xlu0 %334, %v176
        %v336 = vpop.permute.xlu0 %335
        %v338 = vmul.f32 %v336, %v331
        %v339 = vmul.f32 %v336, %v332
        %v340 = vadd.f32 %v325, %v338
        %v341 = vadd.f32 %v326, %v339
        %342 = vrot.lane.b32.xlu0 %v242, 127
        %v343 = vpop.permute.xlu0 %342
        %344 = vrot.lane.b32.xlu0 %v243, 127
        %v345 = vpop.permute.xlu0 %344
        %v346 = vsel %vm317, %v343, %v345
        %v347 = vsel %vm317, %v345, %v343
        %349 = vset.pattern.permute.xlu0 0
        %350 = vperm.xlu0 %349, %v179
        %v351 = vpop.permute.xlu0 %350
        %v353 = vmul.f32 %v351, %v346
        %v354 = vmul.f32 %v351, %v347
        %v355 = vadd.f32 %v340, %v353
        %v356 = vadd.f32 %v341, %v354
        %v357 = vsel %vm211, 1, 0
        %v358 = vsel %vm212, 1, 0
        %vm359 = vcmp.eq.s32.totalorder %v357, 1
        %vm360 = vcmp.eq.s32.totalorder %v358, 1
        %v361 = vsel %vm359, %v311, 0.0
        %v362 = vsel %vm360, %v312, 0.0
        %v363 = vadd.f32 %v267, %v361
        %v364 = vadd.f32 %v268, %v362
        %v365 = vsel %vm213, 1, 0
        %v366 = vsel %vm214, 1, 0
        %vm367 = vcmp.eq.s32.totalorder %v365, 1
        %vm368 = vcmp.eq.s32.totalorder %v366, 1
        %v369 = vsel %vm367, %v355, 0.0
        %v370 = vsel %vm368, %v356, 0.0
        %v371 = vadd.f32 %v363, %v369
        %v372 = vadd.f32 %v364, %v370
        %v373 = vld [vmem:[%s2] sm:$0xff]
        %v374 = vpack.c.bf16 %v373, %v373
        %v375 = vpack.c.bf16 %v371, %v371
        %v376 = vpack.c.bf16 %v372, %v372
        %vm377 = vcmask 31744
        %v379 = vsel %vm377, %v374, 0
        %vm381 = vcmask 1041408
        %v383 = vsel %vm381, %v375, 0
        %v386 = vsel %vm381, %v376, 0
        %388 = vmatprep.subr.bf16.mxu0 %v386
        %389 = vmatpush1.bf16.msra.mxu0 %v383
        %390 = vmatprep.subr.bf16.mxu0 0
        %391 = vmatpush1.bf16.msra.mxu0 0
        %392 = vmatprep.subr.bf16.mxu0 0
        %393 = vmatpush1.bf16.msra.mxu0 0
        %394 = vmatprep.subr.bf16.mxu0 0
        %395 = vmatpush1.bf16.msra.mxu0 0
        %396 = vmatprep.subr.bf16.mxu0 0
        %397 = vmatpush1.bf16.msra.mxu0 0
        %398 = vmatprep.subr.bf16.mxu0 0
        %399 = vmatpush1.bf16.msra.mxu0 0
        %400 = vmatprep.subr.bf16.mxu0 0
        %401 = vmatpush1.bf16.msra.mxu0 0
        %402 = vmatprep.subr.bf16.mxu0 0
        %403 = vmatpush1.bf16.msra.mxu0 0
        %404 = vmatprep.subr.bf16.mxu0 0
        %405 = vmatpush1.bf16.msra.mxu0 0
        %406 = vmatprep.subr.bf16.mxu0 0
        %407 = vmatpush1.bf16.msra.mxu0 0
        %408 = vmatprep.subr.bf16.mxu0 0
        %409 = vmatpush1.bf16.msra.mxu0 0
        %410 = vmatprep.subr.bf16.mxu0 0
        %411 = vmatpush1.bf16.msra.mxu0 0
        %412 = vmatprep.subr.bf16.mxu0 0
        %413 = vmatpush1.bf16.msra.mxu0 0
        %414 = vmatprep.subr.bf16.mxu0 0
        %415 = vmatpush1.bf16.msra.mxu0 0
        %416 = vmatprep.subr.bf16.mxu0 0
        %417 = vmatpush1.bf16.msra.mxu0 0
        %418 = vmatprep.subr.bf16.mxu0 0
        %419 = vmatpush1.bf16.msra.mxu0 0
        %420 = vmatprep.mubr.bf16.mxu0 0
        %421 = vmatmul.mubr.bf16.gmra.mrb[0].mxu0 %v379
        %v422 = vpop.f32.mrb[0].mxu0
        %v423 = vadd.f32 0.0, %v422
        %v424 = vpop.f32.mrb[0].mxu0
        %v425 = vadd.f32 0.0, %v424
        %v426 = vpop.f32.mrb[0].mxu0
        %v427 = vpop.f32.mrb[0].mxu0
        %428 = vdwg.mxu0
        %429 = vst [vmem:[%s163] sm:$0xff] %v423
        %430 = vst [vmem:[%s163 + $0x8] sm:$0xff] %v425
        %s431 = sand.u32 %s93, 1
        %s432 = scalar_lea.sflag [#allocation3], %s431
        %s433 = sand.u32 %s93, 1
        %s434 = smul.addr %s433, 16
        %s435 = scalar_lea.vmem [#allocation2], %s434
        // Predicated region
        $region33: #{tpu_custom_call.1} parent=31 // pred_check
          %p436 = pneg %p103
        $region34: #{tpu_custom_call.1} parent=31 // pred_check_branch
          %438 = sbr.rel (%p436) target = $region36
        $region35: #{tpu_custom_call.1} parent=31 // pred_region
          %s440 = ssub.s32 256, 256
          %441 = vsyncadd %s432, %s440
          %s442 = smul.addr %s17, 2
          %s443 = smul.addr %s442, 128
          %s444 = scalar_lea.hbm %s3, %s443
          %s446 = sshll.u32 %s435, 4
          %s447 = int_to_ptr.vmem [resolvable:$true] %s446
          %449 = dma.vmem_to_hbm [thread:$0]  %s447, 256, %s444, %s432
        $region36: #{tpu_custom_call.1} parent=31 // pred_fallthru
          _
      $region32: #{tpu_custom_call.1} parent=5 // pred_fallthru
        _
      %p450 = scmp.le.s32.totalorder 2, %s12
      // Predicated region
      $region37: #{tpu_custom_call.1} parent=5 // pred_check
        %p451 = pneg %p450
      $region38: #{tpu_custom_call.1} parent=5 // pred_check_branch
        %453 = sbr.rel (%p451) target = $region40
      $region39: #{tpu_custom_call.1} parent=5 // pred_region
        %s454 = ssub.s32 %s12, 2
        // Predicated region
        $region41: #{tpu_custom_call.1} parent=39 // pred_check
          %p455 = pneg %p109
        $region42: #{tpu_custom_call.1} parent=39 // pred_check_branch
          %457 = sbr.rel (%p455) target = $region44
        $region43: #{tpu_custom_call.1} parent=39 // pred_region
          %s458 = sand.u32 %s94, 1
          %s459 = scalar_lea.sflag [#allocation3], %s458
          %s460 = sand.u32 %s94, 1
          %s461 = smul.addr %s460, 16
          %s462 = scalar_lea.vmem [#allocation2], %s461
          %463 = dma.done %s459, 256
        $region44: #{tpu_custom_call.1} parent=39 // pred_fallthru
          _
      $region40: #{tpu_custom_call.1} parent=5 // pred_fallthru
        _
    $region6: #{tpu_custom_call.1} parent=1 // loop_footer
      %s16 = sadd.s32 1, %s12
    $region7: #{tpu_custom_call.1} parent=1 // loop_footer_branch
      %11 = sbr.rel target = $region3
    $region8: #{tpu_custom_call.1} parent=1 // loop_exit
      _
    %464 = vsyncpa [#allocation3], 1
    %s465 = scalar_lea.sflag [#allocation3], 1
    %466 = vsyncpa %s465, 1

</llo_original>
